<compile_context>
chip_gen: v5e
topology: v5e:2x2
jax: 0.10.0
libtpu: 0.0.40
codegen_flags: <defaults>
</compile_context>

<pallas_src>
import numpy as np
import jax
import jax.numpy as jnp
from jax.experimental import pallas as pl
from jax.experimental.pallas import tpu as pltpu


# -----------------------------------------------------------------------------
# Noise schedule (identical math to the PyTorch module, cosine schedule)
# -----------------------------------------------------------------------------
def cosine_beta_schedule(timesteps, s=0.008):
    steps = timesteps + 1
    x = np.linspace(0, timesteps, steps)
    alphas_cumprod = np.cos((x / timesteps + s) / (1 + s) * np.pi * 0.5) ** 2
    alphas_cumprod = alphas_cumprod / alphas_cumprod[0]
    betas = 1 - alphas_cumprod[1:] / alphas_cumprod[:-1]
    return np.clip(betas, 0, 0.999)


class DiffusionSchedule:
    """Buffers registered in Diffusion_Worker.set_new_noise_schedule (cosine)."""

    def __init__(self, diff_steps=1000, beta_start=1e-4, beta_end=2e-2,
                 v_posterior=0.0, parameterization="noise"):
        betas = cosine_beta_schedule(diff_steps)
        alphas = 1.0 - betas
        alphas_cumprod = np.cumprod(alphas, axis=0)
        alphas_cumprod_prev = np.append(1.0, alphas_cumprod[:-1])

        self.num_timesteps = int(betas.shape[0])
        self.betas = betas.astype(np.float32)
        self.alphas_cumprod = alphas_cumprod.astype(np.float32)
        self.sqrt_alphas_cumprod = np.sqrt(alphas_cumprod).astype(np.float32)
        self.sqrt_one_minus_alphas_cumprod = np.sqrt(1.0 - alphas_cumprod).astype(np.float32)

        posterior_variance = ((1 - v_posterior) * betas * (1.0 - alphas_cumprod_prev)
                              / (1.0 - alphas_cumprod) + v_posterior * betas)
        self.posterior_variance = posterior_variance.astype(np.float32)

        with np.errstate(divide="ignore", invalid="ignore"):
            if parameterization == "noise":
                lvlb = betas ** 2 / (2 * posterior_variance * alphas * (1 - alphas_cumprod))
            elif parameterization == "x_start":
                # NOTE: reproduces the reference expression verbatim, including its
                # `2.0 * 1 - alphas_cumprod` precedence quirk (unused for 'noise').
                lvlb = 0.8 * np.sqrt(alphas_cumprod) / (2.0 * 1 - alphas_cumprod)
            else:
                raise NotImplementedError("mu not supported")
        lvlb[0] = lvlb[1]
        self.lvlb_weights = lvlb.astype(np.float32)
        assert not np.isnan(self.lvlb_weights).all()


# -----------------------------------------------------------------------------
# Pallas kernel: single invocation, all batches resident ([B*D, L] row layout)
# -----------------------------------------------------------------------------
def _diffusion_worker_kernel(sab_ref, s1m_ref,        # (B*D, 1) f32 q_sample coefs (pre-broadcast)
                             x_ref, noise_ref,        # (B*D, L)  f32
                             y0_ref,                  # (B, L, D) f32 (native y_0_hat layout)
                             cond_ref,                # (B*D, Lc) f32
                             w_ref,                   # (L+Lc, L) bf16 fused [w1; w2]
                             b_ref,                   # (1, L)    f32
                             loss_ref,                # SMEM (1,) f32 scalar loss
                             xc_ref):                 # VMEM scratch (B*D, L+Lc) f32
    B = y0_ref.shape[0]
    L = x_ref.shape[-1]

    sab = sab_ref[...]        # sqrt(alpha_bar_t)      per row
    s1m = s1m_ref[...]        # sqrt(1 - alpha_bar_t)  per row
    x = x_ref[...]            # clean target series
    nz = noise_ref[...]       # gaussian noise

    # y_0_hat.permute(0, 2, 1) fused in-kernel: per-batch (L, D) -> (D, L) XLU
    # transposes, stacked along sublanes to the same (B*D, L) row layout as x.
    y0 = jnp.concatenate([y0_ref[b].T for b in range(B)], axis=0)

    # q_sample (interpolated):
    #   y_t = sqrt(a_bar)*y + (1 - sqrt(a_bar))*y_0_hat + sqrt(1 - a_bar)*noise
    x_k = sab * x + (1.0 - sab) * y0 + s1m * nz

    # TODO(synk): the real denoiser `u_net` is an external module passed into
    # __init__; a deterministic 1-layer conditional linear net (ignoring t)
    # stands in here (pred_out branch unused since ablation != 'w_pred_loss').
    # Fused contraction [x_k | cond] -> one MXU matmul, bf16 in / f32 acc.
    xc_ref[:, :L] = x_k
    xc_ref[:, L:] = cond_ref[...]
    h = jnp.dot(xc_ref[...].astype(jnp.bfloat16), w_ref[...],
                preferred_element_type=jnp.float32)
    model_out = jnp.tanh(h + b_ref[...])

    # parameterization == 'noise' -> target = noise; features != 'MS' -> f_dim = 0.
    # mean over (B*D, L) equals mean-of-per-batch-means (equal batch sizes), and
    # original_elbo_weight == 0, so the full mean IS the module's loss_simple.
    diff = model_out - nz
    loss_ref[0] = jnp.mean(diff * diff)


# -----------------------------------------------------------------------------
# Wrapper: Diffusion_Worker.forward
# -----------------------------------------------------------------------------
def diffusion_worker_forward(x, cond_ts, y_0_hat, w12, bias, sched, key):
    B, D, L = x.shape
    Lc = cond_ts.shape[-1]
    nT = sched.num_timesteps
    # Reference samples t as [randint(B//2); T-1-t] -> requires even B.
    assert B % 2 == 0, "Diffusion_Worker t-sampling requires an even batch size"

    # t = cat([randint(0, T, B//2), T - 1 - t], 0) ; noise = randn_like(x)
    kt, kn = jax.random.split(key)
    t_half = jax.random.randint(kt, (B // 2,), 0, nT)
    t = jnp.concatenate([t_half, nT - 1 - t_half], axis=0)
    noise = jax.random.normal(kn, x.shape, dtype=x.dtype)

    # extract_into_tensor -> per-batch scalars, broadcast ONCE to per-row (B*D, 1)
    sab = jnp.asarray(sched.sqrt_alphas_cumprod)[t]
    s1m = jnp.asarray(sched.sqrt_one_minus_alphas_cumprod)[t]
    sab_bd = jnp.repeat(sab, D)[:, None]
    s1m_bd = jnp.repeat(s1m, D)[:, None]

    # Collapse batch into sublanes (free leading-dim reshape, no copy).
    x2 = x.reshape(B * D, L)
    nz2 = noise.reshape(B * D, L)
    c2 = cond_ts.reshape(B * D, Lc)

    vmem = pl.BlockSpec(memory_space=pltpu.MemorySpace.VMEM)
    # TODO(synk): at production batch sizes on v7x, split the B*D rows across the
    # two TensorCores (core_map / parallel grid axis); a single invocation is
    # optimal at these tiny sizes.
    loss_vec = pl.pallas_call(
        _diffusion_worker_kernel,
        out_shape=jax.ShapeDtypeStruct((1,), jnp.float32),
        in_specs=[vmem] * 8,
        out_specs=pl.BlockSpec(memory_space=pltpu.MemorySpace.SMEM),
        scratch_shapes=[pltpu.VMEM((B * D, L + Lc), jnp.float32)],
    )(sab_bd, s1m_bd, x2, nz2, y_0_hat, c2, w12, bias)

    l_simple_weight = 1.0
    # original_elbo_weight == 0.0 in the reference -> the lvlb-weighted loss_vlb
    # term contributes exactly 0 and is dropped (dead code removed).
    return loss_vec[0] * l_simple_weight


# -----------------------------------------------------------------------------
if __name__ == "__main__":
    B, D, L, Lc = 4, 8, 32, 48   # batch, features, target length, condition length

    key = jax.random.PRNGKey(0)
    kx, kc, ky, kw1, kw2, kfwd = jax.random.split(key, 6)

    x = jax.random.normal(kx, (B, D, L), dtype=jnp.float32)         # clean series
    cond_ts = jax.random.normal(kc, (B, D, Lc), dtype=jnp.float32)  # conditioning
    y_0_hat = jax.random.normal(ky, (B, L, D), dtype=jnp.float32)   # prior (pre-permute)

    # deterministic synthetic u_net parameters; fused + bf16 built once at
    # parameter-construction time (MXU-native).
    w1 = 0.1 * jax.random.normal(kw1, (L, L), dtype=jnp.float32)
    w2 = 0.1 * jax.random.normal(kw2, (Lc, L), dtype=jnp.float32)
    w12 = jnp.concatenate([w1, w2], axis=0).astype(jnp.bfloat16)    # (L+Lc, L)
    bias = jnp.zeros((1, L), dtype=jnp.float32)

    sched = DiffusionSchedule(diff_steps=1000, parameterization="noise")

    fwd = jax.jit(lambda xx, cc, yy, ww, bb, kk:
                  diffusion_worker_forward(xx, cc, yy, ww, bb, sched, kk))
    loss = fwd(x, cond_ts, y_0_hat, w12, bias, kfwd)
    jax.block_until_ready(loss)
    assert loss.shape == () and bool(jnp.isfinite(loss))
    print("KERNEL_OK")
</pallas_src>

<mosaic_0001>
module attributes {stable_mosaic.version = 11 : i64} {
  func.func @_diffusion_worker_kernel(%arg0: memref<32x1xf32, #tpu.memory_space<vmem>>, %arg1: memref<32x1xf32, #tpu.memory_space<vmem>>, %arg2: memref<32x32xf32, #tpu.memory_space<vmem>>, %arg3: memref<32x32xf32, #tpu.memory_space<vmem>>, %arg4: memref<4x32x8xf32, #tpu.memory_space<vmem>>, %arg5: memref<32x48xf32, #tpu.memory_space<vmem>>, %arg6: memref<80x32xbf16, #tpu.memory_space<vmem>>, %arg7: memref<1x32xf32, #tpu.memory_space<vmem>>, %arg8: memref<1xf32, #tpu.memory_space<smem>>, %arg9: memref<32x80xf32, #tpu.memory_space<vmem>>) attributes {dimension_semantics = [], scalar_prefetch = 0 : i64, scratch_operands = 1 : i64, tpu.core_type = #tpu.core_type<tc>} {
    %c0 = arith.constant 0 : index
    %c0_0 = arith.constant 0 : index
    %0 = vector.load %arg0[%c0, %c0_0] : memref<32x1xf32, #tpu.memory_space<vmem>>, vector<32x1xf32>
    %c0_1 = arith.constant 0 : index
    %c0_2 = arith.constant 0 : index
    %1 = vector.load %arg1[%c0_1, %c0_2] : memref<32x1xf32, #tpu.memory_space<vmem>>, vector<32x1xf32>
    %c0_3 = arith.constant 0 : index
    %c0_4 = arith.constant 0 : index
    %2 = vector.load %arg2[%c0_3, %c0_4] : memref<32x32xf32, #tpu.memory_space<vmem>>, vector<32x32xf32>
    %c0_5 = arith.constant 0 : index
    %c0_6 = arith.constant 0 : index
    %3 = vector.load %arg3[%c0_5, %c0_6] : memref<32x32xf32, #tpu.memory_space<vmem>>, vector<32x32xf32>
    %c0_7 = arith.constant 0 : index
    %c0_8 = arith.constant 0 : index
    %c0_9 = arith.constant 0 : index
    %4 = vector.load %arg4[%c0_7, %c0_8, %c0_9] : memref<4x32x8xf32, #tpu.memory_space<vmem>>, vector<1x32x8xf32>
    %5 = vector.shape_cast %4 : vector<1x32x8xf32> to vector<32x8xf32>
    %6 = tpu.transpose %5, [1, 0] : vector<32x8xf32> -> vector<8x32xf32>
    %c1 = arith.constant 1 : index
    %c0_10 = arith.constant 0 : index
    %c0_11 = arith.constant 0 : index
    %7 = vector.load %arg4[%c1, %c0_10, %c0_11] : memref<4x32x8xf32, #tpu.memory_space<vmem>>, vector<1x32x8xf32>
    %8 = vector.shape_cast %7 : vector<1x32x8xf32> to vector<32x8xf32>
    %9 = tpu.transpose %8, [1, 0] : vector<32x8xf32> -> vector<8x32xf32>
    %c2 = arith.constant 2 : index
    %c0_12 = arith.constant 0 : index
    %c0_13 = arith.constant 0 : index
    %10 = vector.load %arg4[%c2, %c0_12, %c0_13] : memref<4x32x8xf32, #tpu.memory_space<vmem>>, vector<1x32x8xf32>
    %11 = vector.shape_cast %10 : vector<1x32x8xf32> to vector<32x8xf32>
    %12 = tpu.transpose %11, [1, 0] : vector<32x8xf32> -> vector<8x32xf32>
    %c3 = arith.constant 3 : index
    %c0_14 = arith.constant 0 : index
    %c0_15 = arith.constant 0 : index
    %13 = vector.load %arg4[%c3, %c0_14, %c0_15] : memref<4x32x8xf32, #tpu.memory_space<vmem>>, vector<1x32x8xf32>
    %14 = vector.shape_cast %13 : vector<1x32x8xf32> to vector<32x8xf32>
    %15 = tpu.transpose %14, [1, 0] : vector<32x8xf32> -> vector<8x32xf32>
    %16 = tpu.concatenate %6, %9, %12, %15 in 0 : vector<8x32xf32>, vector<8x32xf32>, vector<8x32xf32>, vector<8x32xf32> -> vector<32x32xf32>
    %17 = vector.broadcast %0 : vector<32x1xf32> to vector<32x32xf32>
    %18 = arith.mulf %17, %2 : vector<32x32xf32>
    %cst = arith.constant 1.000000e+00 : f32
    %19 = vector.broadcast %cst : f32 to vector<32x1xf32>
    %20 = arith.subf %19, %0 : vector<32x1xf32>
    %21 = vector.broadcast %20 : vector<32x1xf32> to vector<32x32xf32>
    %22 = arith.mulf %21, %16 : vector<32x32xf32>
    %23 = arith.addf %18, %22 : vector<32x32xf32>
    %24 = vector.broadcast %1 : vector<32x1xf32> to vector<32x32xf32>
    %25 = arith.mulf %24, %3 : vector<32x32xf32>
    %26 = arith.addf %23, %25 : vector<32x32xf32>
    %c0_16 = arith.constant 0 : index
    %c0_17 = arith.constant 0 : index
    %27 = vector.load %arg9[%c0_16, %c0_17] : memref<32x80xf32, #tpu.memory_space<vmem>>, vector<32x32xf32>
    tpu.vector_store %arg9[%c0_16, %c0_17], %26 {strides = array<i32>} : memref<32x80xf32, #tpu.memory_space<vmem>>, vector<32x32xf32>,
    %c0_18 = arith.constant 0 : index
    %c0_19 = arith.constant 0 : index
    %28 = vector.load %arg5[%c0_18, %c0_19] : memref<32x48xf32, #tpu.memory_space<vmem>>, vector<32x48xf32>
    %c0_20 = arith.constant 0 : index
    %c32 = arith.constant 32 : index
    %29 = vector.load %arg9[%c0_20, %c32] : memref<32x80xf32, #tpu.memory_space<vmem>>, vector<32x48xf32>
    tpu.vector_store %arg9[%c0_20, %c32], %28 {strides = array<i32>} : memref<32x80xf32, #tpu.memory_space<vmem>>, vector<32x48xf32>,
    %c0_21 = arith.constant 0 : index
    %c0_22 = arith.constant 0 : index
    %30 = vector.load %arg9[%c0_21, %c0_22] : memref<32x80xf32, #tpu.memory_space<vmem>>, vector<32x80xf32>
    %31 = arith.truncf %30 : vector<32x80xf32> to vector<32x80xbf16>
    %c0_23 = arith.constant 0 : index
    %c0_24 = arith.constant 0 : index
    %32 = vector.load %arg6[%c0_23, %c0_24] : memref<80x32xbf16, #tpu.memory_space<vmem>>, vector<80x32xbf16>
    %cst_25 = arith.constant dense<0.000000e+00> : vector<32x32xf32>
    %33 = tpu.matmul %31, %32, %cst_25 {dimension_numbers = #tpu.dot_dimension_numbers<[1], [0], [0], [1], [0, 0, 1, 1], [], []>} : vector<32x80xbf16>, vector<80x32xbf16>, vector<32x32xf32> -> vector<32x32xf32>
    %c0_26 = arith.constant 0 : index
    %c0_27 = arith.constant 0 : index
    %34 = vector.load %arg7[%c0_26, %c0_27] : memref<1x32xf32, #tpu.memory_space<vmem>>, vector<1x32xf32>
    %35 = vector.broadcast %34 : vector<1x32xf32> to vector<32x32xf32>
    %36 = arith.addf %33, %35 : vector<32x32xf32>
    %37 = math.tanh %36 : vector<32x32xf32>
    %38 = arith.subf %37, %3 : vector<32x32xf32>
    %39 = arith.mulf %38, %38 : vector<32x32xf32>
    %40 = vector.shape_cast %39 : vector<32x32xf32> to vector<1x32x32xf32>
    %cst_28 = arith.constant dense<0.000000e+00> : vector<1xf32>
    %41 = vector.multi_reduction <add>, %40, %cst_28 [1, 2] : vector<1x32x32xf32> to vector<1xf32>
    %42 = vector.shape_cast %41 : vector<1xf32> to vector<1x1x1xf32>
    %43 = vector.extract %42[0, 0, 0] : f32 from vector<1x1x1xf32>
    %cst_29 = arith.constant 1.024000e+03 : f32
    %44 = arith.divf %43, %cst_29 : f32
    %c0_30 = arith.constant 0 : index
    %45 = memref.load %arg8[%c0_30] : memref<1xf32, #tpu.memory_space<smem>>
    memref.store %44, %arg8[%c0_30] : memref<1xf32, #tpu.memory_space<smem>>
    return
  }
}

</mosaic_0001>

<llo_original>
// kernel: _lambda_.1
$region0: #{_lambda_.1}
  #allocation0 [shape = 'u32[]', space=smem, size = 0x4, offset = 0x4, fixed_abs, tag = 'smem constant byte address 0x4 - core index']
  #allocation1 [shape = 'u32[72,128]{1,0:T(1,128)}', space=vmem, size = 0x9000, scoped, tag = 'internal scratch']
  #allocation2 [shape = 'f32[32,80]{1,0:T(8,128)}', space=vmem, size = 0x4000, scoped, tag = 'scratch operand']
  %s0 = inlined_call_operand.vmem [shape: f32[32,1], index: 0, kind: input, shape index: {}]
  %s1 = inlined_call_operand.vmem [shape: f32[32,1], index: 1, kind: input, shape index: {}]
  %s2 = inlined_call_operand.vmem [shape: f32[32,32], index: 2, kind: input, shape index: {}]
  %s3 = inlined_call_operand.vmem [shape: f32[32,32], index: 3, kind: input, shape index: {}]
  %s4 = inlined_call_operand.vmem [shape: f32[4,32,8], index: 4, kind: input, shape index: {}]
  %s5 = inlined_call_operand.vmem [shape: f32[32,48], index: 5, kind: input, shape index: {}]
  %s6 = inlined_call_operand.vmem [shape: bf16[80,32], index: 6, kind: input, shape index: {}]
  %s7 = inlined_call_operand.vmem [shape: f32[1,32], index: 7, kind: input, shape index: {}]
  %s8 = inlined_call_operand.hbm [shape: f32[1], index: 8, kind: output, shape index: {}]
  %s9 = sld [smem:[#allocation0]]
  $region42: #{_lambda_.1} parent=0
    _
  %s11 = ssub.s32 1, %s9
  %s12 = scalar_select 0, %s11, %s9
  $region1: #{_lambda_.1} parent=0
    #allocation3 [shape = 'u8[512]{0}', space=smem, size = 0x200, scoped, tag = 'output window, operand 0, single buffered']
    #allocation4 [shape = 's32[1]{0}', space=sflag, size = 0x4, scoped, tag = 'scoped memory for _lambda_.1']
    %13 = vsyncpa [#allocation4], 0
    // Predicated region
    $region2: #{_lambda_.1} parent=1 // pred_check
      _
    $region3: #{_lambda_.1} parent=1 // pred_check_branch
      %15 = sbr.rel (0) target = $region5
    $region4: #{_lambda_.1} parent=1 // pred_region
      _
    $region5: #{_lambda_.1} parent=1 // pred_fallthru
      _
    // Predicated region
    $region6: #{_lambda_.1} parent=1 // pred_check
      _
    $region7: #{_lambda_.1} parent=1 // pred_check_branch
      %17 = sbr.rel (0) target = $region9
    $region8: #{_lambda_.1} parent=1 // pred_region
      _
    $region9: #{_lambda_.1} parent=1 // pred_fallthru
      _
    // Predicated region
    $region10: #{_lambda_.1} parent=1 // pred_check
      _
    $region11: #{_lambda_.1} parent=1 // pred_check_branch
      %19 = sbr.rel (0) target = $region13
    $region12: #{_lambda_.1} parent=1 // pred_region
      _
    $region13: #{_lambda_.1} parent=1 // pred_fallthru
      _
    // Predicated region
    $region14: #{_lambda_.1} parent=1 // pred_check
      _
    $region15: #{_lambda_.1} parent=1 // pred_check_branch
      %21 = sbr.rel (0) target = $region17
    $region16: #{_lambda_.1} parent=1 // pred_region
      _
    $region17: #{_lambda_.1} parent=1 // pred_fallthru
      _
    // Predicated region
    $region18: #{_lambda_.1} parent=1 // pred_check
      _
    $region19: #{_lambda_.1} parent=1 // pred_check_branch
      %23 = sbr.rel (0) target = $region21
    $region20: #{_lambda_.1} parent=1 // pred_region
      _
    $region21: #{_lambda_.1} parent=1 // pred_fallthru
      _
    // Predicated region
    $region22: #{_lambda_.1} parent=1 // pred_check
      _
    $region23: #{_lambda_.1} parent=1 // pred_check_branch
      %25 = sbr.rel (0) target = $region25
    $region24: #{_lambda_.1} parent=1 // pred_region
      _
    $region25: #{_lambda_.1} parent=1 // pred_fallthru
      _
    // Predicated region
    $region26: #{_lambda_.1} parent=1 // pred_check
      _
    $region27: #{_lambda_.1} parent=1 // pred_check_branch
      %27 = sbr.rel (0) target = $region29
    $region28: #{_lambda_.1} parent=1 // pred_region
      _
    $region29: #{_lambda_.1} parent=1 // pred_fallthru
      _
    // Predicated region
    $region30: #{_lambda_.1} parent=1 // pred_check
      _
    $region31: #{_lambda_.1} parent=1 // pred_check_branch
      %29 = sbr.rel (0) target = $region33
    $region32: #{_lambda_.1} parent=1 // pred_region
      _
    $region33: #{_lambda_.1} parent=1 // pred_fallthru
      _
    %v31 = vld [vmem:[%s0] sm:$0xff]
    %v32 = vld [vmem:[%s0 + $0x8] sm:$0xff]
    %v33 = vld [vmem:[%s0 + $0x10] sm:$0xff]
    %v34 = vld [vmem:[%s0 + $0x18] sm:$0xff]
    %v35 = vld [vmem:[%s1] sm:$0xff]
    %v36 = vld [vmem:[%s1 + $0x8] sm:$0xff]
    %v37 = vld [vmem:[%s1 + $0x10] sm:$0xff]
    %v38 = vld [vmem:[%s1 + $0x18] sm:$0xff]
    %v39 = vld [vmem:[%s2] sm:$0xff]
    %v40 = vld [vmem:[%s2 + $0x8] sm:$0xff]
    %v41 = vld [vmem:[%s2 + $0x10] sm:$0xff]
    %v42 = vld [vmem:[%s2 + $0x18] sm:$0xff]
    %v43 = vld [vmem:[%s3] sm:$0xff]
    %v44 = vld [vmem:[%s3 + $0x8] sm:$0xff]
    %v45 = vld [vmem:[%s3 + $0x10] sm:$0xff]
    %v46 = vld [vmem:[%s3 + $0x18] sm:$0xff]
    %v47 = vld [vmem:[%s4] sm:$0xff]
    %v48 = vld [vmem:[%s4 + $0x8] sm:$0xff]
    %v49 = vld [vmem:[%s4 + $0x10] sm:$0xff]
    %v50 = vld [vmem:[%s4 + $0x18] sm:$0xff]
    %51 = vxpose.xlu0.b32.start [1/16] %v47, 128
    %52 = vxpose.xlu0.b32.cont [2/16] %v48, 128
    %53 = vxpose.xlu0.b32.cont [3/16] %v49, 128
    %54 = vxpose.xlu0.b32.cont [4/16] %v50, 128
    %55 = vxpose.xlu0.b32.cont [5/16] 0.0, 128
    %56 = vxpose.xlu0.b32.cont [6/16] 0.0, 128
    %57 = vxpose.xlu0.b32.cont [7/16] 0.0, 128
    %58 = vxpose.xlu0.b32.cont [8/16] 0.0, 128
    %59 = vxpose.xlu0.b32.cont [9/16] 0.0, 128
    %60 = vxpose.xlu0.b32.cont [10/16] 0.0, 128
    %61 = vxpose.xlu0.b32.cont [11/16] 0.0, 128
    %62 = vxpose.xlu0.b32.cont [12/16] 0.0, 128
    %63 = vxpose.xlu0.b32.cont [13/16] 0.0, 128
    %64 = vxpose.xlu0.b32.cont [14/16] 0.0, 128
    %65 = vxpose.xlu0.b32.cont [15/16] 0.0, 128
    %66 = vxpose.xlu0.b32.end [16/16] 0.0, 128
    %v67 = vpop.trf.xlu0
    %v68 = vpop.trf.xlu0
    %v69 = vpop.trf.xlu0
    %v70 = vpop.trf.xlu0
    %v71 = vpop.trf.xlu0
    %v72 = vpop.trf.xlu0
    %v73 = vpop.trf.xlu0
    %v74 = vpop.trf.xlu0
    %v75 = vpop.trf.xlu0
    %v76 = vpop.trf.xlu0
    %v77 = vpop.trf.xlu0
    %v78 = vpop.trf.xlu0
    %v79 = vpop.trf.xlu0
    %v80 = vpop.trf.xlu0
    %v81 = vpop.trf.xlu0
    %v82 = vpop.trf.xlu0
    %s83 = scalar_lea.vmem %s4, 32
    %v84 = vld [vmem:[%s83] sm:$0xff]
    %v85 = vld [vmem:[%s83 + $0x8] sm:$0xff]
    %v86 = vld [vmem:[%s83 + $0x10] sm:$0xff]
    %v87 = vld [vmem:[%s83 + $0x18] sm:$0xff]
    %88 = vxpose.xlu0.b32.start [1/16] %v84, 128
    %89 = vxpose.xlu0.b32.cont [2/16] %v85, 128
    %90 = vxpose.xlu0.b32.cont [3/16] %v86, 128
    %91 = vxpose.xlu0.b32.cont [4/16] %v87, 128
    %92 = vxpose.xlu0.b32.cont [5/16] 0.0, 128
    %93 = vxpose.xlu0.b32.cont [6/16] 0.0, 128
    %94 = vxpose.xlu0.b32.cont [7/16] 0.0, 128
    %95 = vxpose.xlu0.b32.cont [8/16] 0.0, 128
    %96 = vxpose.xlu0.b32.cont [9/16] 0.0, 128
    %97 = vxpose.xlu0.b32.cont [10/16] 0.0, 128
    %98 = vxpose.xlu0.b32.cont [11/16] 0.0, 128
    %99 = vxpose.xlu0.b32.cont [12/16] 0.0, 128
    %100 = vxpose.xlu0.b32.cont [13/16] 0.0, 128
    %101 = vxpose.xlu0.b32.cont [14/16] 0.0, 128
    %102 = vxpose.xlu0.b32.cont [15/16] 0.0, 128
    %103 = vxpose.xlu0.b32.end [16/16] 0.0, 128
    %v104 = vpop.trf.xlu0
    %v105 = vpop.trf.xlu0
    %v106 = vpop.trf.xlu0
    %v107 = vpop.trf.xlu0
    %v108 = vpop.trf.xlu0
    %v109 = vpop.trf.xlu0
    %v110 = vpop.trf.xlu0
    %v111 = vpop.trf.xlu0
    %v112 = vpop.trf.xlu0
    %v113 = vpop.trf.xlu0
    %v114 = vpop.trf.xlu0
    %v115 = vpop.trf.xlu0
    %v116 = vpop.trf.xlu0
    %v117 = vpop.trf.xlu0
    %v118 = vpop.trf.xlu0
    %v119 = vpop.trf.xlu0
    %s120 = scalar_lea.vmem %s4, 64
    %v121 = vld [vmem:[%s120] sm:$0xff]
    %v122 = vld [vmem:[%s120 + $0x8] sm:$0xff]
    %v123 = vld [vmem:[%s120 + $0x10] sm:$0xff]
    %v124 = vld [vmem:[%s120 + $0x18] sm:$0xff]
    %125 = vxpose.xlu0.b32.start [1/16] %v121, 128
    %126 = vxpose.xlu0.b32.cont [2/16] %v122, 128
    %127 = vxpose.xlu0.b32.cont [3/16] %v123, 128
    %128 = vxpose.xlu0.b32.cont [4/16] %v124, 128
    %129 = vxpose.xlu0.b32.cont [5/16] 0.0, 128
    %130 = vxpose.xlu0.b32.cont [6/16] 0.0, 128
    %131 = vxpose.xlu0.b32.cont [7/16] 0.0, 128
    %132 = vxpose.xlu0.b32.cont [8/16] 0.0, 128
    %133 = vxpose.xlu0.b32.cont [9/16] 0.0, 128
    %134 = vxpose.xlu0.b32.cont [10/16] 0.0, 128
    %135 = vxpose.xlu0.b32.cont [11/16] 0.0, 128
    %136 = vxpose.xlu0.b32.cont [12/16] 0.0, 128
    %137 = vxpose.xlu0.b32.cont [13/16] 0.0, 128
    %138 = vxpose.xlu0.b32.cont [14/16] 0.0, 128
    %139 = vxpose.xlu0.b32.cont [15/16] 0.0, 128
    %140 = vxpose.xlu0.b32.end [16/16] 0.0, 128
    %v141 = vpop.trf.xlu0
    %v142 = vpop.trf.xlu0
    %v143 = vpop.trf.xlu0
    %v144 = vpop.trf.xlu0
    %v145 = vpop.trf.xlu0
    %v146 = vpop.trf.xlu0
    %v147 = vpop.trf.xlu0
    %v148 = vpop.trf.xlu0
    %v149 = vpop.trf.xlu0
    %v150 = vpop.trf.xlu0
    %v151 = vpop.trf.xlu0
    %v152 = vpop.trf.xlu0
    %v153 = vpop.trf.xlu0
    %v154 = vpop.trf.xlu0
    %v155 = vpop.trf.xlu0
    %v156 = vpop.trf.xlu0
    %s157 = scalar_lea.vmem %s4, 96
    %v158 = vld [vmem:[%s157] sm:$0xff]
    %v159 = vld [vmem:[%s157 + $0x8] sm:$0xff]
    %v160 = vld [vmem:[%s157 + $0x10] sm:$0xff]
    %v161 = vld [vmem:[%s157 + $0x18] sm:$0xff]
    %162 = vxpose.xlu0.b32.start [1/16] %v158, 128
    %163 = vxpose.xlu0.b32.cont [2/16] %v159, 128
    %164 = vxpose.xlu0.b32.cont [3/16] %v160, 128
    %165 = vxpose.xlu0.b32.cont [4/16] %v161, 128
    %166 = vxpose.xlu0.b32.cont [5/16] 0.0, 128
    %167 = vxpose.xlu0.b32.cont [6/16] 0.0, 128
    %168 = vxpose.xlu0.b32.cont [7/16] 0.0, 128
    %169 = vxpose.xlu0.b32.cont [8/16] 0.0, 128
    %170 = vxpose.xlu0.b32.cont [9/16] 0.0, 128
    %171 = vxpose.xlu0.b32.cont [10/16] 0.0, 128
    %172 = vxpose.xlu0.b32.cont [11/16] 0.0, 128
    %173 = vxpose.xlu0.b32.cont [12/16] 0.0, 128
    %174 = vxpose.xlu0.b32.cont [13/16] 0.0, 128
    %175 = vxpose.xlu0.b32.cont [14/16] 0.0, 128
    %176 = vxpose.xlu0.b32.cont [15/16] 0.0, 128
    %177 = vxpose.xlu0.b32.end [16/16] 0.0, 128
    %v178 = vpop.trf.xlu0
    %v179 = vpop.trf.xlu0
    %v180 = vpop.trf.xlu0
    %v181 = vpop.trf.xlu0
    %v182 = vpop.trf.xlu0
    %v183 = vpop.trf.xlu0
    %v184 = vpop.trf.xlu0
    %v185 = vpop.trf.xlu0
    %v186 = vpop.trf.xlu0
    %v187 = vpop.trf.xlu0
    %v188 = vpop.trf.xlu0
    %v189 = vpop.trf.xlu0
    %v190 = vpop.trf.xlu0
    %v191 = vpop.trf.xlu0
    %v192 = vpop.trf.xlu0
    %v193 = vpop.trf.xlu0
    %195 = vset.pattern.permute.xlu0 0
    %196 = vperm.xlu0 %195, %v31
    %v197 = vpop.permute.xlu0 %196
    %200 = vset.pattern.permute.xlu0 0
    %201 = vperm.xlu0 %200, %v32
    %v202 = vpop.permute.xlu0 %201
    %205 = vset.pattern.permute.xlu0 0
    %206 = vperm.xlu0 %205, %v33
    %v207 = vpop.permute.xlu0 %206
    %210 = vset.pattern.permute.xlu0 0
    %211 = vperm.xlu0 %210, %v34
    %v212 = vpop.permute.xlu0 %211
    %v214 = vmul.f32 %v197, %v39
    %v215 = vmul.f32 %v202, %v40
    %v216 = vmul.f32 %v207, %v41
    %v217 = vmul.f32 %v212, %v42
    %v218 = vsub.f32 1.0, %v31
    %v219 = vsub.f32 1.0, %v32
    %v220 = vsub.f32 1.0, %v33
    %v221 = vsub.f32 1.0, %v34
    %223 = vset.pattern.permute.xlu0 0
    %224 = vperm.xlu0 %223, %v218
    %v225 = vpop.permute.xlu0 %224
    %228 = vset.pattern.permute.xlu0 0
    %229 = vperm.xlu0 %228, %v219
    %v230 = vpop.permute.xlu0 %229
    %233 = vset.pattern.permute.xlu0 0
    %234 = vperm.xlu0 %233, %v220
    %v235 = vpop.permute.xlu0 %234
    %238 = vset.pattern.permute.xlu0 0
    %239 = vperm.xlu0 %238, %v221
    %v240 = vpop.permute.xlu0 %239
    %v242 = vmul.f32 %v225, %v67
    %v243 = vmul.f32 %v230, %v104
    %v244 = vmul.f32 %v235, %v141
    %v245 = vmul.f32 %v240, %v178
    %v246 = vadd.f32 %v214, %v242
    %v247 = vadd.f32 %v215, %v243
    %v248 = vadd.f32 %v216, %v244
    %v249 = vadd.f32 %v217, %v245
    %251 = vset.pattern.permute.xlu0 0
    %252 = vperm.xlu0 %251, %v35
    %v253 = vpop.permute.xlu0 %252
    %256 = vset.pattern.permute.xlu0 0
    %257 = vperm.xlu0 %256, %v36
    %v258 = vpop.permute.xlu0 %257
    %261 = vset.pattern.permute.xlu0 0
    %262 = vperm.xlu0 %261, %v37
    %v263 = vpop.permute.xlu0 %262
    %266 = vset.pattern.permute.xlu0 0
    %267 = vperm.xlu0 %266, %v38
    %v268 = vpop.permute.xlu0 %267
    %v270 = vmul.f32 %v253, %v43
    %v271 = vmul.f32 %v258, %v44
    %v272 = vmul.f32 %v263, %v45
    %v273 = vmul.f32 %v268, %v46
    %v274 = vadd.f32 %v246, %v270
    %v275 = vadd.f32 %v247, %v271
    %v276 = vadd.f32 %v248, %v272
    %v277 = vadd.f32 %v249, %v273
    %vm278 = vcmask 261120
    %279 = vst.msk [vmem:[#allocation2] sm:$0xff] %vm278, %v274
    %280 = vst.msk [vmem:[#allocation2 + $0x8] sm:$0xff] %vm278, %v275
    %281 = vst.msk [vmem:[#allocation2 + $0x10] sm:$0xff] %vm278, %v276
    %282 = vst.msk [vmem:[#allocation2 + $0x18] sm:$0xff] %vm278, %v277
    %v283 = vld [vmem:[%s5] sm:$0xff]
    %v284 = vld [vmem:[%s5 + $0x8] sm:$0xff]
    %v285 = vld [vmem:[%s5 + $0x10] sm:$0xff]
    %v286 = vld [vmem:[%s5 + $0x18] sm:$0xff]
    %291 = vrot.lane.b32.xlu0 %v283, 32
    %v292 = vpop.permute.xlu0 %291
    %293 = vrot.lane.b32.xlu0 %v284, 32
    %v294 = vpop.permute.xlu0 %293
    %295 = vrot.lane.b32.xlu0 %v285, 32
    %v296 = vpop.permute.xlu0 %295
    %297 = vrot.lane.b32.xlu0 %v286, 32
    %v298 = vpop.permute.xlu0 %297
    %vm303 = vcmask 654592
    %304 = vst.msk [vmem:[#allocation2] sm:$0xff] %vm303, %v292
    %305 = vst.msk [vmem:[#allocation2 + $0x8] sm:$0xff] %vm303, %v294
    %306 = vst.msk [vmem:[#allocation2 + $0x10] sm:$0xff] %vm303, %v296
    %307 = vst.msk [vmem:[#allocation2 + $0x18] sm:$0xff] %vm303, %v298
    %v308 = vld [vmem:[#allocation2] sm:$0xff]
    %v309 = vld [vmem:[#allocation2 + $0x8] sm:$0xff]
    %v310 = vld [vmem:[#allocation2 + $0x10] sm:$0xff]
    %v311 = vld [vmem:[#allocation2 + $0x18] sm:$0xff]
    %v312 = vpack.c.bf16 %v309, %v308
    %v313 = vpack.c.bf16 %v311, %v310
    %v314 = vld [vmem:[%s6] sm:$0xf]
    %v315 = vld [vmem:[%s6 + $0x4] sm:$0xf]
    %v316 = vld [vmem:[%s6 + $0x8] sm:$0xf]
    %v317 = vld [vmem:[%s6 + $0xc] sm:$0xf]
    %v318 = vld [vmem:[%s6 + $0x10] sm:$0xf]
    %v319 = vld [vmem:[%s6 + $0x14] sm:$0xf]
    %v320 = vld [vmem:[%s6 + $0x18] sm:$0xf]
    %v321 = vld [vmem:[%s6 + $0x1c] sm:$0xf]
    %v322 = vld [vmem:[%s6 + $0x20] sm:$0xf]
    %v323 = vld [vmem:[%s6 + $0x24] sm:$0xf]
    %v324 = vld [vmem:[%s7] sm:$0x1]
    %v326 = vperm.slane %v324, 0
    %v338 = vunpack.c.l.b16 %v314
    %v339 = vunpack.c.l.b16 %v315
    %v340 = vunpack.c.l.b16 %v316
    %v341 = vunpack.c.l.b16 %v317
    %v342 = vunpack.c.l.b16 %v318
    %v343 = vunpack.c.l.b16 %v319
    %v344 = vunpack.c.l.b16 %v320
    %v345 = vunpack.c.l.b16 %v321
    %v346 = vunpack.c.l.b16 %v322
    %v347 = vunpack.c.l.b16 %v323
    %v348 = vpack.c.b16 %v339, %v338
    %v349 = vpack.c.b16 %v341, %v340
    %v350 = vpack.c.b16 %v343, %v342
    %v351 = vpack.c.b16 %v345, %v344
    %v352 = vpack.c.b16 %v347, %v346
    %vm358 = vcmask 654336
    %v360 = vsel %vm358, %v312, 0
    %v363 = vsel %vm358, %v313, 0
    %365 = vmatpush.bf16.msra.mxu0 0
    %366 = vmatpush.bf16.msra.mxu0 0
    %367 = vmatpush.bf16.msra.mxu0 0
    %368 = vmatpush.bf16.msra.mxu0 %v352
    %369 = vmatpush.bf16.msra.mxu0 %v351
    %370 = vmatpush.bf16.msra.mxu0 %v350
    %371 = vmatpush.bf16.msra.mxu0 %v349
    %372 = vmatpush.bf16.msra.mxu0 %v348
    %373 = vmatmul.bf16.gmra.mxu0 %v360
    %v374 = vpop.f32.mrf.mxu0
    %v375 = vadd.f32 %v326, %v374
    %v376 = vpop.f32.mrf.mxu0
    %v377 = vadd.f32 %v326, %v376
    %378 = vmatmul.bf16.gmra.mxu0 %v363
    %v379 = vpop.f32.mrf.mxu0
    %v380 = vadd.f32 %v326, %v379
    %v381 = vpop.f32.mrf.mxu0
    %v382 = vadd.f32 %v326, %v381
    %383 = vdwg.mxu0
    %v384 = vtanh.pop %v375
    %v385 = vtanh.pop %v377
    %v386 = vtanh.pop %v380
    %v387 = vtanh.pop %v382
    %v388 = vsub.f32 %v384, %v43
    %v389 = vsub.f32 %v385, %v44
    %v390 = vsub.f32 %v386, %v45
    %v391 = vsub.f32 %v387, %v46
    %v392 = vmul.f32 %v388, %v388
    %v393 = vmul.f32 %v389, %v389
    %v394 = vmul.f32 %v390, %v390
    %v395 = vmul.f32 %v391, %v391
    %v396 = vsel %vm278, %v392, 0.0
    %v397 = vsel %vm278, %v393, 0.0
    %v398 = vadd.f32 %v396, %v397
    %v399 = vsel %vm278, %v394, 0.0
    %v400 = vadd.f32 %v398, %v399
    %v401 = vsel %vm278, %v395, 0.0
    %v402 = vadd.f32 %v400, %v401
    %403 = vadd.xlane.f32.xlu0 %v402
    %v404 = vpop.xlane.xlu0 %403
    %v405 = vrot.slane %v404, 4
    %v406 = vadd.f32 %v404, %v405
    %v407 = vrot.slane %v406, 2
    %v408 = vadd.f32 %v406, %v407
    %v409 = vrot.slane %v408, 1
    %v410 = vadd.f32 %v408, %v409
    %s411 = vtos %v410
    %v412 = vrcp.pop 1024.0
    %v413 = vmul.f32 1024.0, %v412
    %v414 = vsub.f32 1.0, %v413
    %v415 = vmul.f32 %v412, %v414
    %v416 = vadd.f32 %v412, %v415
    %vm417 = vweird.f32 %v412
    %v418 = vsel %vm417, %v412, %v416
    %s419 = vtos %v418
    %s420 = smul.f32 %s411, %s419
    %s421 = scalar_lea.smem [#allocation3], 0
    %422 = sst [smem:[%s421]] %s420
    // Predicated region
    $region34: #{_lambda_.1} parent=1 // pred_check
      _
    $region35: #{_lambda_.1} parent=1 // pred_check_branch
      %424 = sbr.rel (0) target = $region37
    $region36: #{_lambda_.1} parent=1 // pred_region
      %426 = vsyncadd [#allocation4], 0
      %s428 = sshll.u32 %s8, 4
      %s429 = int_to_ptr.hbm [resolvable:$true] %s428
      %431 = dma.smem_to_hbm [#allocation3], 16, %s429, [#allocation4]
    $region37: #{_lambda_.1} parent=1 // pred_fallthru
      _
    // Predicated region
    $region38: #{_lambda_.1} parent=1 // pred_check
      _
    $region39: #{_lambda_.1} parent=1 // pred_check_branch
      %433 = sbr.rel (0) target = $region41
    $region40: #{_lambda_.1} parent=1 // pred_region
      %435 = dma.done [#allocation4], 16
    $region41: #{_lambda_.1} parent=1 // pred_fallthru
      _
    %436 = sfence
    %437 = vsyncpa [#allocation4], 1

</llo_original>
